<compile_context>
chip_gen: v7x
topology: tpu7x:2x2x1
jax: 0.10.0
libtpu: 0.0.40
codegen_flags: <defaults>
</compile_context>

<pallas_src>
import functools

import jax
import jax.numpy as jnp
from jax import lax
from jax.experimental import pallas as pl
from jax.experimental.pallas import tpu as pltpu


def _residual_kernel(x_ref, w1_ref, w2_ref, m_ref, o_ref, stk_ref, *, W):
    """One image per grid step.

    x_ref/o_ref : (1, Cp, HWp) f32   activation slab (channels x flat spatial)
    w*_ref      : (Cp, Kt)     mdt   stacked conv weights (BN scale folded),
                                     BN shift in column 9*Cp
    m_ref       : (9, Cp, HWp) f32   per-tap 0/1 validity masks (pre-broadcast)
    stk_ref     : (Kt, HWp)    mdt   scratch: 9 rolled+masked patches + ones row
    """
    Cp = x_ref.shape[1]
    HWp = x_ref.shape[2]
    Kt = stk_ref.shape[0]
    mdt = stk_ref.dtype
    x = x_ref[0]                                    # (Cp, HWp) f32; also residual

    # Tail of the stacked-K scratch: one "ones" row (folds the per-channel BN
    # shift into the matmul) followed by zero padding rows.  Re-written every
    # step (cheap, <=8 rows) so each TensorCore sees an initialized scratch.
    tail = Kt - 9 * Cp
    row = lax.broadcasted_iota(jnp.int32, (tail, HWp), 0)
    stk_ref[pl.ds(9 * Cp, tail), :] = jnp.where(row == 0, 1.0, 0.0).astype(mdt)

    offsets = [(oy, ox) for oy in (-1, 0, 1) for ox in (-1, 0, 1)]

    def conv3x3(act, w_ref):
        # 3x3 conv as ONE stacked matmul: lane-roll each tap (XLU), zero the
        # out-of-image lanes with the precomputed mask (VPU, f32 so it also
        # lowers on v5e which has no bf16 VALU), cast once on the way into the
        # matmul-dtype scratch, then a single K = 9*Cp + 1 MXU contraction
        # (f32 accumulation) that also applies the folded BN shift.
        for t, (oy, ox) in enumerate(offsets):
            s = oy * W + ox                         # flat spatial shift
            if s == 0:
                patch = act
            else:
                patch = pltpu.roll(act, (-s) % HWp, axis=1) * m_ref[t]
            stk_ref[pl.ds(t * Cp, Cp), :] = patch.astype(mdt)
        return jnp.dot(w_ref[...], stk_ref[...],
                       preferred_element_type=jnp.float32)

    h = jnp.maximum(conv3x3(x, w1_ref), 0.0)        # conv1 + BN1 + ReLU
    y = conv3x3(h, w2_ref)                          # conv2 + BN2
    o_ref[0] = jnp.maximum(y + x, 0.0).astype(o_ref.dtype)   # residual + ReLU


def _round_up(v, m):
    return ((v + m - 1) // m) * m


def _fold_weight(w, scale, shift, C, Cp, Kt, matmul_dtype):
    """OIHW conv weight + eval-mode BN -> stacked (Cp, Kt) matmul operand."""
    # (9, Cout, Cin) per-tap matrices, BN scale folded into output channels.
    w_taps = jnp.transpose(w, (2, 3, 0, 1)).reshape(9, C, C) * scale[None, :, None]
    pc = Cp - C
    if pc:
        w_taps = jnp.pad(w_taps, ((0, 0), (0, pc), (0, pc)))
        shift = jnp.pad(shift, (0, pc))
    # [o, t*Cp + i] = w_taps[t, o, i]  (matches the kernel's scratch stacking).
    w_stk = jnp.transpose(w_taps, (1, 0, 2)).reshape(Cp, 9 * Cp)
    cols = [w_stk, shift.reshape(Cp, 1)]            # BN shift -> bias column
    if Kt > 9 * Cp + 1:
        cols.append(jnp.zeros((Cp, Kt - 9 * Cp - 1), w_stk.dtype))
    return jnp.concatenate(cols, axis=1).astype(matmul_dtype)


def residual_layer(x, w1, w2, gamma1, beta1, mean1, var1,
                   gamma2, beta2, mean2, var2, eps=1e-5,
                   matmul_dtype=jnp.bfloat16):
    """x: (N, C, H, W) f32 NCHW.  w1, w2: (C, C, 3, 3) PyTorch OIHW.
    BatchNorm in eval mode (running stats folded into the conv weights).
    matmul_dtype=bfloat16 (default) uses the fast MXU path with f32
    accumulation; pass jnp.float32 for bit-accurate verification."""
    N, C, H, W = x.shape
    HW = H * W
    assert w1.shape == (C, C, 3, 3) and w2.shape == (C, C, 3, 3), \
        "residual add requires in_c == out_c"

    # Fold eval-mode BN:  BN(z) = z*s + t.
    s1 = gamma1 * lax.rsqrt(var1 + eps); t1 = beta1 - mean1 * s1
    s2 = gamma2 * lax.rsqrt(var2 + eps); t2 = beta2 - mean2 * s2

    Cp = max(8, _round_up(C, 8))            # sublane-pad channels
    HWp = _round_up(HW, 128)                # lane-pad flat spatial (dense vst)
    Kt = _round_up(9 * Cp + 1, 8)           # stacked contraction depth (+bias)

    w1m = _fold_weight(w1, s1, t1, C, Cp, Kt, matmul_dtype)
    w2m = _fold_weight(w2, s2, t2, C, Cp, Kt, matmul_dtype)

    x_flat = x.reshape(N, C, HW)                      # free reshape (contiguous)
    x_flat = jnp.pad(x_flat, ((0, 0), (0, Cp - C), (0, HWp - HW)))

    # Per-tap validity masks over the flat spatial axis, pre-broadcast to Cp
    # sublanes so the in-kernel multiply is a plain packed VPU op.  Padded
    # lanes are masked off for every non-center tap; any rolled read that
    # lands outside the real image is always a masked tap, so padding is safe.
    yy, xx = jnp.meshgrid(jnp.arange(H), jnp.arange(W), indexing="ij")
    masks = [((yy + oy >= 0) & (yy + oy < H) & (xx + ox >= 0) & (xx + ox < W))
             .reshape(HW) for oy in (-1, 0, 1) for ox in (-1, 0, 1)]
    mask = jnp.pad(jnp.stack(masks).astype(jnp.float32), ((0, 0), (0, HWp - HW)))
    mask = jnp.broadcast_to(mask[:, None, :], (9, Cp, HWp))

    # Explicit scoped-VMEM budget from the actual block sizes (+ headroom),
    # clamped to v7x's 64 MiB physical VMEM.
    mmb = jnp.dtype(matmul_dtype).itemsize
    block_bytes = (2 * Cp * HWp * 4            # x block, double-buffered
                   + 2 * Cp * HWp * 4          # out block, double-buffered
                   + 2 * 2 * Cp * Kt * mmb     # w1, w2 blocks
                   + 2 * 9 * Cp * HWp * 4      # mask block
                   + Kt * HWp * mmb            # stacked scratch
                   + 6 * Cp * HWp * 4)         # live temporaries / spill headroom
    vmem_limit = min(64 * 1024 * 1024,
                     max(16 * 1024 * 1024, int(1.5 * block_bytes) + (2 << 20)))

    kernel = functools.partial(_residual_kernel, W=W)
    out = pl.pallas_call(
        kernel,
        out_shape=jax.ShapeDtypeStruct((N, Cp, HWp), x.dtype),
        grid_spec=pltpu.PrefetchScalarGridSpec(
            num_scalar_prefetch=0,
            grid=(N,),
            in_specs=[
                pl.BlockSpec((1, Cp, HWp), lambda n: (n, 0, 0)),   # x (+ residual)
                pl.BlockSpec((Cp, Kt),     lambda n: (0, 0)),      # w1 (BN1 folded)
                pl.BlockSpec((Cp, Kt),     lambda n: (0, 0)),      # w2 (BN2 folded)
                pl.BlockSpec((9, Cp, HWp), lambda n: (0, 0, 0)),   # tap masks
            ],
            out_specs=pl.BlockSpec((1, Cp, HWp), lambda n: (n, 0, 0)),
            scratch_shapes=[pltpu.VMEM((Kt, HWp), matmul_dtype)],
        ),
        compiler_params=pltpu.CompilerParams(
            dimension_semantics=("parallel",),
            vmem_limit_bytes=vmem_limit),
    )(x_flat, w1m, w2m, mask)

    return out[:, :C, :HW].reshape(N, C, H, W)


def residual_layer_ref(x, w1, w2, gamma1, beta1, mean1, var1,
                       gamma2, beta2, mean2, var2, eps=1e-5):
    """Pure-JAX reference (eval-mode BN), NCHW/OIHW like the PyTorch module."""
    dn = lax.conv_dimension_numbers(x.shape, w1.shape, ('NCHW', 'OIHW', 'NCHW'))
    s1 = gamma1 * lax.rsqrt(var1 + eps); t1 = beta1 - mean1 * s1
    s2 = gamma2 * lax.rsqrt(var2 + eps); t2 = beta2 - mean2 * s2
    h = lax.conv_general_dilated(x, w1, (1, 1), 'SAME', dimension_numbers=dn)
    h = jnp.maximum(h * s1[None, :, None, None] + t1[None, :, None, None], 0.0)
    y = lax.conv_general_dilated(h, w2, (1, 1), 'SAME', dimension_numbers=dn)
    y = y * s2[None, :, None, None] + t2[None, :, None, None]
    return jnp.maximum(y + x, 0.0)


if __name__ == "__main__":
    # Small shapes consistent with the module (in_c == out_c so the residual works).
    N, C, H, W = 2, 4, 16, 16
    eps = 1e-5

    key = jax.random.PRNGKey(0)
    keys = jax.random.split(key, 11)

    x = jax.random.normal(keys[0], (N, C, H, W), jnp.float32)              # NCHW
    w1 = 0.2 * jax.random.normal(keys[1], (C, C, 3, 3), jnp.float32)       # OIHW
    w2 = 0.2 * jax.random.normal(keys[2], (C, C, 3, 3), jnp.float32)

    gamma1 = 1.0 + 0.1 * jax.random.normal(keys[3], (C,), jnp.float32)
    beta1 = 0.1 * jax.random.normal(keys[4], (C,), jnp.float32)
    mean1 = 0.1 * jax.random.normal(keys[5], (C,), jnp.float32)
    var1 = 0.5 + jnp.abs(jax.random.normal(keys[6], (C,), jnp.float32))

    gamma2 = 1.0 + 0.1 * jax.random.normal(keys[7], (C,), jnp.float32)
    beta2 = 0.1 * jax.random.normal(keys[8], (C,), jnp.float32)
    mean2 = 0.1 * jax.random.normal(keys[9], (C,), jnp.float32)
    var2 = 0.5 + jnp.abs(jax.random.normal(keys[10], (C,), jnp.float32))

    ref = residual_layer_ref(x, w1, w2, gamma1, beta1, mean1, var1,
                             gamma2, beta2, mean2, var2, eps=eps)

    # Default production path: bf16 MXU matmuls with f32 accumulation.
    out_bf16 = residual_layer(x, w1, w2, gamma1, beta1, mean1, var1,
                              gamma2, beta2, mean2, var2, eps=eps)
    out_bf16 = jax.block_until_ready(out_bf16)

    # f32-matmul path: tight algorithmic check against the reference.
    out_f32 = residual_layer(x, w1, w2, gamma1, beta1, mean1, var1,
                             gamma2, beta2, mean2, var2, eps=eps,
                             matmul_dtype=jnp.float32)
    out_f32 = jax.block_until_ready(out_f32)

    assert out_bf16.shape == (N, C, H, W)
    assert jnp.allclose(out_f32, ref, atol=1e-4, rtol=1e-4), "f32 path mismatch"
    # bf16 operands -> looser tolerance (expected precision, not a kernel bug).
    assert jnp.allclose(out_bf16, ref, atol=1e-1, rtol=1e-1), "bf16 path mismatch"

    print("KERNEL_OK")
</pallas_src>

<mosaic_0001>
module attributes {stable_mosaic.version = 11 : i64} {
  func.func @_residual_kernel(%arg0: i32, %arg1: memref<1x8x256xf32, #tpu.memory_space<vmem>>, %arg2: memref<8x80xbf16, #tpu.memory_space<vmem>>, %arg3: memref<8x80xbf16, #tpu.memory_space<vmem>>, %arg4: memref<9x8x256xf32, #tpu.memory_space<vmem>>, %arg5: memref<1x8x256xf32, #tpu.memory_space<vmem>>, %arg6: memref<80x256xbf16, #tpu.memory_space<vmem>>) attributes {dimension_semantics = [#tpu.dimension_semantics<parallel>], iteration_bounds = array<i64: 2>, scalar_prefetch = 0 : i64, scratch_operands = 1 : i64, tpu.core_type = #tpu.core_type<tc>, window_params = [{transform_indices = @transform_0, window_bounds = array<i64: 1, 8, 256>}, {pipeline_mode = #tpu.pipeline_mode<synchronous>, transform_indices = @transform_1, window_bounds = array<i64: 8, 80>}, {pipeline_mode = #tpu.pipeline_mode<synchronous>, transform_indices = @transform_2, window_bounds = array<i64: 8, 80>}, {pipeline_mode = #tpu.pipeline_mode<synchronous>, transform_indices = @transform_3, window_bounds = array<i64: 9, 8, 256>}, {transform_indices = @transform_4, window_bounds = array<i64: 1, 8, 256>}]} {
    %c0 = arith.constant 0 : index
    %c0_0 = arith.constant 0 : index
    %c0_1 = arith.constant 0 : index
    %0 = vector.load %arg1[%c0, %c0_0, %c0_1] : memref<1x8x256xf32, #tpu.memory_space<vmem>>, vector<1x8x256xf32>
    %1 = vector.shape_cast %0 : vector<1x8x256xf32> to vector<8x256xf32>
    %2 = tpu.iota {dimensions = array<i32: 0>} : vector<8x256xi32>
    %c0_i32 = arith.constant 0 : i32
    %3 = vector.broadcast %c0_i32 : i32 to vector<8x256xi32>
    %4 = arith.cmpi eq, %2, %3 : vector<8x256xi32>
    %cst = arith.constant 1.000000e+00 : f32
    %cst_2 = arith.constant 0.000000e+00 : f32
    %5 = vector.broadcast %cst : f32 to vector<8x256xf32>
    %6 = vector.broadcast %cst_2 : f32 to vector<8x256xf32>
    %7 = arith.select %4, %5, %6 : vector<8x256xi1>, vector<8x256xf32>
    %8 = arith.truncf %7 : vector<8x256xf32> to vector<8x256xbf16>
    %c72 = arith.constant 72 : index
    %c0_3 = arith.constant 0 : index
    %9 = vector.load %arg6[%c72, %c0_3] : memref<80x256xbf16, #tpu.memory_space<vmem>>, vector<8x256xbf16>
    tpu.vector_store %arg6[%c72, %c0_3], %8 {strides = array<i32>} : memref<80x256xbf16, #tpu.memory_space<vmem>>, vector<8x256xbf16>,
    %c17_i32 = arith.constant 17 : i32
    %10 = tpu.dynamic_rotate %1 by %c17_i32 dim 1 : vector<8x256xf32>, i32 -> vector<8x256xf32>
    %c0_4 = arith.constant 0 : index
    %c0_5 = arith.constant 0 : index
    %c0_6 = arith.constant 0 : index
    %11 = vector.load %arg4[%c0_4, %c0_5, %c0_6] : memref<9x8x256xf32, #tpu.memory_space<vmem>>, vector<1x8x256xf32>
    %12 = vector.shape_cast %11 : vector<1x8x256xf32> to vector<8x256xf32>
    %13 = arith.mulf %10, %12 : vector<8x256xf32>
    %14 = arith.truncf %13 : vector<8x256xf32> to vector<8x256xbf16>
    %c0_7 = arith.constant 0 : index
    %c0_8 = arith.constant 0 : index
    %15 = vector.load %arg6[%c0_7, %c0_8] : memref<80x256xbf16, #tpu.memory_space<vmem>>, vector<8x256xbf16>
    tpu.vector_store %arg6[%c0_7, %c0_8], %14 {strides = array<i32>} : memref<80x256xbf16, #tpu.memory_space<vmem>>, vector<8x256xbf16>,
    %c16_i32 = arith.constant 16 : i32
    %16 = tpu.dynamic_rotate %1 by %c16_i32 dim 1 : vector<8x256xf32>, i32 -> vector<8x256xf32>
    %c1 = arith.constant 1 : index
    %c0_9 = arith.constant 0 : index
    %c0_10 = arith.constant 0 : index
    %17 = vector.load %arg4[%c1, %c0_9, %c0_10] : memref<9x8x256xf32, #tpu.memory_space<vmem>>, vector<1x8x256xf32>
    %18 = vector.shape_cast %17 : vector<1x8x256xf32> to vector<8x256xf32>
    %19 = arith.mulf %16, %18 : vector<8x256xf32>
    %20 = arith.truncf %19 : vector<8x256xf32> to vector<8x256xbf16>
    %c8 = arith.constant 8 : index
    %c0_11 = arith.constant 0 : index
    %21 = vector.load %arg6[%c8, %c0_11] : memref<80x256xbf16, #tpu.memory_space<vmem>>, vector<8x256xbf16>
    tpu.vector_store %arg6[%c8, %c0_11], %20 {strides = array<i32>} : memref<80x256xbf16, #tpu.memory_space<vmem>>, vector<8x256xbf16>,
    %c15_i32 = arith.constant 15 : i32
    %22 = tpu.dynamic_rotate %1 by %c15_i32 dim 1 : vector<8x256xf32>, i32 -> vector<8x256xf32>
    %c2 = arith.constant 2 : index
    %c0_12 = arith.constant 0 : index
    %c0_13 = arith.constant 0 : index
    %23 = vector.load %arg4[%c2, %c0_12, %c0_13] : memref<9x8x256xf32, #tpu.memory_space<vmem>>, vector<1x8x256xf32>
    %24 = vector.shape_cast %23 : vector<1x8x256xf32> to vector<8x256xf32>
    %25 = arith.mulf %22, %24 : vector<8x256xf32>
    %26 = arith.truncf %25 : vector<8x256xf32> to vector<8x256xbf16>
    %c16 = arith.constant 16 : index
    %c0_14 = arith.constant 0 : index
    %27 = vector.load %arg6[%c16, %c0_14] : memref<80x256xbf16, #tpu.memory_space<vmem>>, vector<8x256xbf16>
    tpu.vector_store %arg6[%c16, %c0_14], %26 {strides = array<i32>} : memref<80x256xbf16, #tpu.memory_space<vmem>>, vector<8x256xbf16>,
    %c1_i32 = arith.constant 1 : i32
    %28 = tpu.dynamic_rotate %1 by %c1_i32 dim 1 : vector<8x256xf32>, i32 -> vector<8x256xf32>
    %c3 = arith.constant 3 : index
    %c0_15 = arith.constant 0 : index
    %c0_16 = arith.constant 0 : index
    %29 = vector.load %arg4[%c3, %c0_15, %c0_16] : memref<9x8x256xf32, #tpu.memory_space<vmem>>, vector<1x8x256xf32>
    %30 = vector.shape_cast %29 : vector<1x8x256xf32> to vector<8x256xf32>
    %31 = arith.mulf %28, %30 : vector<8x256xf32>
    %32 = arith.truncf %31 : vector<8x256xf32> to vector<8x256xbf16>
    %c24 = arith.constant 24 : index
    %c0_17 = arith.constant 0 : index
    %33 = vector.load %arg6[%c24, %c0_17] : memref<80x256xbf16, #tpu.memory_space<vmem>>, vector<8x256xbf16>
    tpu.vector_store %arg6[%c24, %c0_17], %32 {strides = array<i32>} : memref<80x256xbf16, #tpu.memory_space<vmem>>, vector<8x256xbf16>,
    %34 = arith.truncf %1 : vector<8x256xf32> to vector<8x256xbf16>
    %c32 = arith.constant 32 : index
    %c0_18 = arith.constant 0 : index
    %35 = vector.load %arg6[%c32, %c0_18] : memref<80x256xbf16, #tpu.memory_space<vmem>>, vector<8x256xbf16>
    tpu.vector_store %arg6[%c32, %c0_18], %34 {strides = array<i32>} : memref<80x256xbf16, #tpu.memory_space<vmem>>, vector<8x256xbf16>,
    %c255_i32 = arith.constant 255 : i32
    %36 = tpu.dynamic_rotate %1 by %c255_i32 dim 1 : vector<8x256xf32>, i32 -> vector<8x256xf32>
    %c5 = arith.constant 5 : index
    %c0_19 = arith.constant 0 : index
    %c0_20 = arith.constant 0 : index
    %37 = vector.load %arg4[%c5, %c0_19, %c0_20] : memref<9x8x256xf32, #tpu.memory_space<vmem>>, vector<1x8x256xf32>
    %38 = vector.shape_cast %37 : vector<1x8x256xf32> to vector<8x256xf32>
    %39 = arith.mulf %36, %38 : vector<8x256xf32>
    %40 = arith.truncf %39 : vector<8x256xf32> to vector<8x256xbf16>
    %c40 = arith.constant 40 : index
    %c0_21 = arith.constant 0 : index
    %41 = vector.load %arg6[%c40, %c0_21] : memref<80x256xbf16, #tpu.memory_space<vmem>>, vector<8x256xbf16>
    tpu.vector_store %arg6[%c40, %c0_21], %40 {strides = array<i32>} : memref<80x256xbf16, #tpu.memory_space<vmem>>, vector<8x256xbf16>,
    %c241_i32 = arith.constant 241 : i32
    %42 = tpu.dynamic_rotate %1 by %c241_i32 dim 1 : vector<8x256xf32>, i32 -> vector<8x256xf32>
    %c6 = arith.constant 6 : index
    %c0_22 = arith.constant 0 : index
    %c0_23 = arith.constant 0 : index
    %43 = vector.load %arg4[%c6, %c0_22, %c0_23] : memref<9x8x256xf32, #tpu.memory_space<vmem>>, vector<1x8x256xf32>
    %44 = vector.shape_cast %43 : vector<1x8x256xf32> to vector<8x256xf32>
    %45 = arith.mulf %42, %44 : vector<8x256xf32>
    %46 = arith.truncf %45 : vector<8x256xf32> to vector<8x256xbf16>
    %c48 = arith.constant 48 : index
    %c0_24 = arith.constant 0 : index
    %47 = vector.load %arg6[%c48, %c0_24] : memref<80x256xbf16, #tpu.memory_space<vmem>>, vector<8x256xbf16>
    tpu.vector_store %arg6[%c48, %c0_24], %46 {strides = array<i32>} : memref<80x256xbf16, #tpu.memory_space<vmem>>, vector<8x256xbf16>,
    %c240_i32 = arith.constant 240 : i32
    %48 = tpu.dynamic_rotate %1 by %c240_i32 dim 1 : vector<8x256xf32>, i32 -> vector<8x256xf32>
    %c7 = arith.constant 7 : index
    %c0_25 = arith.constant 0 : index
    %c0_26 = arith.constant 0 : index
    %49 = vector.load %arg4[%c7, %c0_25, %c0_26] : memref<9x8x256xf32, #tpu.memory_space<vmem>>, vector<1x8x256xf32>
    %50 = vector.shape_cast %49 : vector<1x8x256xf32> to vector<8x256xf32>
    %51 = arith.mulf %48, %50 : vector<8x256xf32>
    %52 = arith.truncf %51 : vector<8x256xf32> to vector<8x256xbf16>
    %c56 = arith.constant 56 : index
    %c0_27 = arith.constant 0 : index
    %53 = vector.load %arg6[%c56, %c0_27] : memref<80x256xbf16, #tpu.memory_space<vmem>>, vector<8x256xbf16>
    tpu.vector_store %arg6[%c56, %c0_27], %52 {strides = array<i32>} : memref<80x256xbf16, #tpu.memory_space<vmem>>, vector<8x256xbf16>,
    %c239_i32 = arith.constant 239 : i32
    %54 = tpu.dynamic_rotate %1 by %c239_i32 dim 1 : vector<8x256xf32>, i32 -> vector<8x256xf32>
    %c8_28 = arith.constant 8 : index
    %c0_29 = arith.constant 0 : index
    %c0_30 = arith.constant 0 : index
    %55 = vector.load %arg4[%c8_28, %c0_29, %c0_30] : memref<9x8x256xf32, #tpu.memory_space<vmem>>, vector<1x8x256xf32>
    %56 = vector.shape_cast %55 : vector<1x8x256xf32> to vector<8x256xf32>
    %57 = arith.mulf %54, %56 : vector<8x256xf32>
    %58 = arith.truncf %57 : vector<8x256xf32> to vector<8x256xbf16>
    %c64 = arith.constant 64 : index
    %c0_31 = arith.constant 0 : index
    %59 = vector.load %arg6[%c64, %c0_31] : memref<80x256xbf16, #tpu.memory_space<vmem>>, vector<8x256xbf16>
    tpu.vector_store %arg6[%c64, %c0_31], %58 {strides = array<i32>} : memref<80x256xbf16, #tpu.memory_space<vmem>>, vector<8x256xbf16>,
    %c0_32 = arith.constant 0 : index
    %c0_33 = arith.constant 0 : index
    %60 = vector.load %arg2[%c0_32, %c0_33] : memref<8x80xbf16, #tpu.memory_space<vmem>>, vector<8x80xbf16>
    %c0_34 = arith.constant 0 : index
    %c0_35 = arith.constant 0 : index
    %61 = vector.load %arg6[%c0_34, %c0_35] : memref<80x256xbf16, #tpu.memory_space<vmem>>, vector<80x256xbf16>
    %cst_36 = arith.constant dense<0.000000e+00> : vector<8x256xf32>
    %62 = tpu.matmul %60, %61, %cst_36 {dimension_numbers = #tpu.dot_dimension_numbers<[1], [0], [0], [1], [0, 0, 1, 1], [], []>} : vector<8x80xbf16>, vector<80x256xbf16>, vector<8x256xf32> -> vector<8x256xf32>
    %cst_37 = arith.constant 0.000000e+00 : f32
    %63 = vector.broadcast %cst_37 : f32 to vector<8x256xf32>
    %64 = arith.maximumf %62, %63 : vector<8x256xf32>
    %c17_i32_38 = arith.constant 17 : i32
    %65 = tpu.dynamic_rotate %64 by %c17_i32_38 dim 1 : vector<8x256xf32>, i32 -> vector<8x256xf32>
    %c0_39 = arith.constant 0 : index
    %c0_40 = arith.constant 0 : index
    %c0_41 = arith.constant 0 : index
    %66 = vector.load %arg4[%c0_39, %c0_40, %c0_41] : memref<9x8x256xf32, #tpu.memory_space<vmem>>, vector<1x8x256xf32>
    %67 = vector.shape_cast %66 : vector<1x8x256xf32> to vector<8x256xf32>
    %68 = arith.mulf %65, %67 : vector<8x256xf32>
    %69 = arith.truncf %68 : vector<8x256xf32> to vector<8x256xbf16>
    %c0_42 = arith.constant 0 : index
    %c0_43 = arith.constant 0 : index
    %70 = vector.load %arg6[%c0_42, %c0_43] : memref<80x256xbf16, #tpu.memory_space<vmem>>, vector<8x256xbf16>
    tpu.vector_store %arg6[%c0_42, %c0_43], %69 {strides = array<i32>} : memref<80x256xbf16, #tpu.memory_space<vmem>>, vector<8x256xbf16>,
    %c16_i32_44 = arith.constant 16 : i32
    %71 = tpu.dynamic_rotate %64 by %c16_i32_44 dim 1 : vector<8x256xf32>, i32 -> vector<8x256xf32>
    %c1_45 = arith.constant 1 : index
    %c0_46 = arith.constant 0 : index
    %c0_47 = arith.constant 0 : index
    %72 = vector.load %arg4[%c1_45, %c0_46, %c0_47] : memref<9x8x256xf32, #tpu.memory_space<vmem>>, vector<1x8x256xf32>
    %73 = vector.shape_cast %72 : vector<1x8x256xf32> to vector<8x256xf32>
    %74 = arith.mulf %71, %73 : vector<8x256xf32>
    %75 = arith.truncf %74 : vector<8x256xf32> to vector<8x256xbf16>
    %c8_48 = arith.constant 8 : index
    %c0_49 = arith.constant 0 : index
    %76 = vector.load %arg6[%c8_48, %c0_49] : memref<80x256xbf16, #tpu.memory_space<vmem>>, vector<8x256xbf16>
    tpu.vector_store %arg6[%c8_48, %c0_49], %75 {strides = array<i32>} : memref<80x256xbf16, #tpu.memory_space<vmem>>, vector<8x256xbf16>,
    %c15_i32_50 = arith.constant 15 : i32
    %77 = tpu.dynamic_rotate %64 by %c15_i32_50 dim 1 : vector<8x256xf32>, i32 -> vector<8x256xf32>
    %c2_51 = arith.constant 2 : index
    %c0_52 = arith.constant 0 : index
    %c0_53 = arith.constant 0 : index
    %78 = vector.load %arg4[%c2_51, %c0_52, %c0_53] : memref<9x8x256xf32, #tpu.memory_space<vmem>>, vector<1x8x256xf32>
    %79 = vector.shape_cast %78 : vector<1x8x256xf32> to vector<8x256xf32>
    %80 = arith.mulf %77, %79 : vector<8x256xf32>
    %81 = arith.truncf %80 : vector<8x256xf32> to vector<8x256xbf16>
    %c16_54 = arith.constant 16 : index
    %c0_55 = arith.constant 0 : index
    %82 = vector.load %arg6[%c16_54, %c0_55] : memref<80x256xbf16, #tpu.memory_space<vmem>>, vector<8x256xbf16>
    tpu.vector_store %arg6[%c16_54, %c0_55], %81 {strides = array<i32>} : memref<80x256xbf16, #tpu.memory_space<vmem>>, vector<8x256xbf16>,
    %c1_i32_56 = arith.constant 1 : i32
    %83 = tpu.dynamic_rotate %64 by %c1_i32_56 dim 1 : vector<8x256xf32>, i32 -> vector<8x256xf32>
    %c3_57 = arith.constant 3 : index
    %c0_58 = arith.constant 0 : index
    %c0_59 = arith.constant 0 : index
    %84 = vector.load %arg4[%c3_57, %c0_58, %c0_59] : memref<9x8x256xf32, #tpu.memory_space<vmem>>, vector<1x8x256xf32>
    %85 = vector.shape_cast %84 : vector<1x8x256xf32> to vector<8x256xf32>
    %86 = arith.mulf %83, %85 : vector<8x256xf32>
    %87 = arith.truncf %86 : vector<8x256xf32> to vector<8x256xbf16>
    %c24_60 = arith.constant 24 : index
    %c0_61 = arith.constant 0 : index
    %88 = vector.load %arg6[%c24_60, %c0_61] : memref<80x256xbf16, #tpu.memory_space<vmem>>, vector<8x256xbf16>
    tpu.vector_store %arg6[%c24_60, %c0_61], %87 {strides = array<i32>} : memref<80x256xbf16, #tpu.memory_space<vmem>>, vector<8x256xbf16>,
    %89 = arith.truncf %64 : vector<8x256xf32> to vector<8x256xbf16>
    %c32_62 = arith.constant 32 : index
    %c0_63 = arith.constant 0 : index
    %90 = vector.load %arg6[%c32_62, %c0_63] : memref<80x256xbf16, #tpu.memory_space<vmem>>, vector<8x256xbf16>
    tpu.vector_store %arg6[%c32_62, %c0_63], %89 {strides = array<i32>} : memref<80x256xbf16, #tpu.memory_space<vmem>>, vector<8x256xbf16>,
    %c255_i32_64 = arith.constant 255 : i32
    %91 = tpu.dynamic_rotate %64 by %c255_i32_64 dim 1 : vector<8x256xf32>, i32 -> vector<8x256xf32>
    %c5_65 = arith.constant 5 : index
    %c0_66 = arith.constant 0 : index
    %c0_67 = arith.constant 0 : index
    %92 = vector.load %arg4[%c5_65, %c0_66, %c0_67] : memref<9x8x256xf32, #tpu.memory_space<vmem>>, vector<1x8x256xf32>
    %93 = vector.shape_cast %92 : vector<1x8x256xf32> to vector<8x256xf32>
    %94 = arith.mulf %91, %93 : vector<8x256xf32>
    %95 = arith.truncf %94 : vector<8x256xf32> to vector<8x256xbf16>
    %c40_68 = arith.constant 40 : index
    %c0_69 = arith.constant 0 : index
    %96 = vector.load %arg6[%c40_68, %c0_69] : memref<80x256xbf16, #tpu.memory_space<vmem>>, vector<8x256xbf16>
    tpu.vector_store %arg6[%c40_68, %c0_69], %95 {strides = array<i32>} : memref<80x256xbf16, #tpu.memory_space<vmem>>, vector<8x256xbf16>,
    %c241_i32_70 = arith.constant 241 : i32
    %97 = tpu.dynamic_rotate %64 by %c241_i32_70 dim 1 : vector<8x256xf32>, i32 -> vector<8x256xf32>
    %c6_71 = arith.constant 6 : index
    %c0_72 = arith.constant 0 : index
    %c0_73 = arith.constant 0 : index
    %98 = vector.load %arg4[%c6_71, %c0_72, %c0_73] : memref<9x8x256xf32, #tpu.memory_space<vmem>>, vector<1x8x256xf32>
    %99 = vector.shape_cast %98 : vector<1x8x256xf32> to vector<8x256xf32>
    %100 = arith.mulf %97, %99 : vector<8x256xf32>
    %101 = arith.truncf %100 : vector<8x256xf32> to vector<8x256xbf16>
    %c48_74 = arith.constant 48 : index
    %c0_75 = arith.constant 0 : index
    %102 = vector.load %arg6[%c48_74, %c0_75] : memref<80x256xbf16, #tpu.memory_space<vmem>>, vector<8x256xbf16>
    tpu.vector_store %arg6[%c48_74, %c0_75], %101 {strides = array<i32>} : memref<80x256xbf16, #tpu.memory_space<vmem>>, vector<8x256xbf16>,
    %c240_i32_76 = arith.constant 240 : i32
    %103 = tpu.dynamic_rotate %64 by %c240_i32_76 dim 1 : vector<8x256xf32>, i32 -> vector<8x256xf32>
    %c7_77 = arith.constant 7 : index
    %c0_78 = arith.constant 0 : index
    %c0_79 = arith.constant 0 : index
    %104 = vector.load %arg4[%c7_77, %c0_78, %c0_79] : memref<9x8x256xf32, #tpu.memory_space<vmem>>, vector<1x8x256xf32>
    %105 = vector.shape_cast %104 : vector<1x8x256xf32> to vector<8x256xf32>
    %106 = arith.mulf %103, %105 : vector<8x256xf32>
    %107 = arith.truncf %106 : vector<8x256xf32> to vector<8x256xbf16>
    %c56_80 = arith.constant 56 : index
    %c0_81 = arith.constant 0 : index
    %108 = vector.load %arg6[%c56_80, %c0_81] : memref<80x256xbf16, #tpu.memory_space<vmem>>, vector<8x256xbf16>
    tpu.vector_store %arg6[%c56_80, %c0_81], %107 {strides = array<i32>} : memref<80x256xbf16, #tpu.memory_space<vmem>>, vector<8x256xbf16>,
    %c239_i32_82 = arith.constant 239 : i32
    %109 = tpu.dynamic_rotate %64 by %c239_i32_82 dim 1 : vector<8x256xf32>, i32 -> vector<8x256xf32>
    %c8_83 = arith.constant 8 : index
    %c0_84 = arith.constant 0 : index
    %c0_85 = arith.constant 0 : index
    %110 = vector.load %arg4[%c8_83, %c0_84, %c0_85] : memref<9x8x256xf32, #tpu.memory_space<vmem>>, vector<1x8x256xf32>
    %111 = vector.shape_cast %110 : vector<1x8x256xf32> to vector<8x256xf32>
    %112 = arith.mulf %109, %111 : vector<8x256xf32>
    %113 = arith.truncf %112 : vector<8x256xf32> to vector<8x256xbf16>
    %c64_86 = arith.constant 64 : index
    %c0_87 = arith.constant 0 : index
    %114 = vector.load %arg6[%c64_86, %c0_87] : memref<80x256xbf16, #tpu.memory_space<vmem>>, vector<8x256xbf16>
    tpu.vector_store %arg6[%c64_86, %c0_87], %113 {strides = array<i32>} : memref<80x256xbf16, #tpu.memory_space<vmem>>, vector<8x256xbf16>,
    %c0_88 = arith.constant 0 : index
    %c0_89 = arith.constant 0 : index
    %115 = vector.load %arg3[%c0_88, %c0_89] : memref<8x80xbf16, #tpu.memory_space<vmem>>, vector<8x80xbf16>
    %c0_90 = arith.constant 0 : index
    %c0_91 = arith.constant 0 : index
    %116 = vector.load %arg6[%c0_90, %c0_91] : memref<80x256xbf16, #tpu.memory_space<vmem>>, vector<80x256xbf16>
    %cst_92 = arith.constant dense<0.000000e+00> : vector<8x256xf32>
    %117 = tpu.matmul %115, %116, %cst_92 {dimension_numbers = #tpu.dot_dimension_numbers<[1], [0], [0], [1], [0, 0, 1, 1], [], []>} : vector<8x80xbf16>, vector<80x256xbf16>, vector<8x256xf32> -> vector<8x256xf32>
    %118 = arith.addf %117, %1 : vector<8x256xf32>
    %cst_93 = arith.constant 0.000000e+00 : f32
    %119 = vector.broadcast %cst_93 : f32 to vector<8x256xf32>
    %120 = arith.maximumf %118, %119 : vector<8x256xf32>
    %c0_94 = arith.constant 0 : index
    %c0_95 = arith.constant 0 : index
    %c0_96 = arith.constant 0 : index
    %121 = vector.load %arg5[%c0_94, %c0_95, %c0_96] : memref<1x8x256xf32, #tpu.memory_space<vmem>>, vector<1x8x256xf32>
    %122 = vector.shape_cast %121 : vector<1x8x256xf32> to vector<8x256xf32>
    %123 = vector.shape_cast %120 : vector<8x256xf32> to vector<1x8x256xf32>
    tpu.vector_store %arg5[%c0_94, %c0_95, %c0_96], %123 {strides = array<i32>} : memref<1x8x256xf32, #tpu.memory_space<vmem>>, vector<1x8x256xf32>,
    return
  }
  func.func @transform_0(%arg0: i32) -> (i32, i32, i32) {
    %c0_i32 = arith.constant 0 : i32
    %c0_i32_0 = arith.constant 0 : i32
    %c0_i32_1 = arith.constant 0 : i32
    return %arg0, %c0_i32, %c0_i32_0 : i32, i32, i32
  }
  func.func @transform_1(%arg0: i32) -> (i32, i32) {
    %c0_i32 = arith.constant 0 : i32
    %c0_i32_0 = arith.constant 0 : i32
    %c0_i32_1 = arith.constant 0 : i32
    return %c0_i32, %c0_i32_0 : i32, i32
  }
  func.func @transform_2(%arg0: i32) -> (i32, i32) {
    %c0_i32 = arith.constant 0 : i32
    %c0_i32_0 = arith.constant 0 : i32
    %c0_i32_1 = arith.constant 0 : i32
    return %c0_i32, %c0_i32_0 : i32, i32
  }
  func.func @transform_3(%arg0: i32) -> (i32, i32, i32) {
    %c0_i32 = arith.constant 0 : i32
    %c0_i32_0 = arith.constant 0 : i32
    %c0_i32_1 = arith.constant 0 : i32
    %c0_i32_2 = arith.constant 0 : i32
    return %c0_i32, %c0_i32_0, %c0_i32_1 : i32, i32, i32
  }
  func.func @transform_4(%arg0: i32) -> (i32, i32, i32) {
    %c0_i32 = arith.constant 0 : i32
    %c0_i32_0 = arith.constant 0 : i32
    %c0_i32_1 = arith.constant 0 : i32
    return %arg0, %c0_i32, %c0_i32_0 : i32, i32, i32
  }
}

</mosaic_0001>

<llo_original>
// kernel: tpu_custom_call.1
$region0: #{tpu_custom_call.1}
  #allocation0 [shape = 'u32[]', space=smem, size = 0x4, offset = 0x4, fixed_abs, tag = 'smem constant byte address 0x4 - core index']
  #allocation1 [shape = 'u32[144,128]{1,0:T(1,128)}', space=vmem, size = 0x12000, scoped, tag = 'internal scratch']
  #allocation2 [shape = 'bf16[80,256]{1,0:T(16,128)(2,1)}', space=vmem, size = 0xa000, scoped, tag = 'scratch operand']
  %s0 = inlined_call_operand.hbm [shape: f32[2,8,256], index: 0, kind: input, shape index: {}]
  %s1 = inlined_call_operand.hbm [shape: bf16[8,80], index: 1, kind: input, shape index: {}]
  %s2 = inlined_call_operand.vmem [shape: bf16[8,80], index: 2, kind: input, shape index: {}]
  %s3 = inlined_call_operand.hbm [shape: f32[9,8,256], index: 3, kind: input, shape index: {}]
  %s4 = inlined_call_operand.hbm [shape: f32[2,8,256], index: 4, kind: output, shape index: {}]
  %s5 = sld [smem:[#allocation0]]
  $region61: #{tpu_custom_call.1} parent=0
    _
  %s7 = ssub.s32 1, %s5
  %s8 = scalar_select 0, %s7, %s5
  $region1: #{tpu_custom_call.1} parent=0
    #allocation3 [shape = 'u8[16384]{0}', space=vmem, size = 0x4000, scoped, tag = 'input window, operand 0']
    #allocation4 [shape = 's32[2]{0}', space=sflag, size = 0x8, scoped, tag = 'scoped memory for tpu_custom_call.1']
    #allocation5 [shape = 's32[2]{0}', space=sflag, size = 0x8, scoped, tag = 'scoped memory for tpu_custom_call.1']
    #allocation6 [shape = 'u8[2048]{0}', space=vmem, size = 0x800, scoped, tag = 'input window, operand 1, single buffered']
    #allocation7 [shape = 's32[1]{0}', space=sflag, size = 0x4, scoped, tag = 'scoped memory for tpu_custom_call.1']
    #allocation8 [shape = 'u8[73728]{0}', space=vmem, size = 0x12000, scoped, tag = 'input window, operand 3, single buffered']
    #allocation9 [shape = 'u8[16384]{0}', space=vmem, size = 0x4000, scoped, tag = 'output window, operand 0']
    %9 = vsyncpa [#allocation4], 0
    %s10 = scalar_lea.sflag [#allocation4], 1
    %11 = vsyncpa %s10, 0
    %12 = vsyncpa [#allocation7], 0
    %13 = vsyncpa [#allocation5], 0
    %s14 = scalar_lea.sflag [#allocation5], 1
    %15 = vsyncpa %s14, 0
    loop: start=0, step=1, limit=4
    $region2: #{tpu_custom_call.1} parent=1 // loop_pre_header
      _
    $region3: #{tpu_custom_call.1} parent=1 // loop_header
      %s17 = sphi 0, %s21
      %p18 = scmp.ge.s32.totalorder %s17, 4
      %s27 = sphi 0, %s29
      %s30 = sphi 0, %s27
      %s31 = sphi 0, %s30
      %s47 = sphi 0, %s31
      %s51 = sphi 0, %s51
      %s53 = sphi 0, %s51
      %s54 = sphi 0, %s53
      %s68 = sphi 0, %s54
      %s72 = sphi 0, %s72
      %s74 = sphi 0, %s72
      %s75 = sphi 0, %s74
      %s89 = sphi 0, %s75
      %s93 = sphi 0, %s93
      %s95 = sphi 0, %s93
      %s96 = sphi 0, %s95
      %s110 = sphi 0, %s96
      %s116 = sphi 0, %s118
      %s119 = sphi 0, %s116
      %s120 = sphi 0, %s119
      %s136 = sphi 0, %s120
    $region4: #{tpu_custom_call.1} parent=1 // loop_header_branch
      %20 = sbr.rel (%p18) target = $region8
    $region5: #{tpu_custom_call.1} parent=1 // loop_body
      %s22 = ssub.s32 %s17, 1
      %s23 = ssub.s32 %s17, 2
      %s24 = sadd.s32 %s17, 1
      %s25 = ssub.s32 %s17, %s24
      %p26 = scmp.eq.s32.totalorder %s25, 0
      %s28 = sadd.s32 %s27, 1
      %s29 = scalar_select %p26, %s27, %s28
      %p32 = pneg %p26
      %p33 = scmp.eq.s32.totalorder %s17, 1
      %p34 = por %p32, %p33
      %p35 = scmp.ne.s32.totalorder %s27, %s30
      %p36 = scmp.eq.s32.totalorder %s17, 0
      %p37 = por %p35, %p36
      %p38 = scmp.ne.s32.totalorder %s27, %s30
      %p39 = scmp.eq.s32.totalorder %s22, 1
      %p40 = por %p38, %p39
      %p41 = scmp.ne.s32.totalorder %s30, %s31
      %p42 = scmp.eq.s32.totalorder %s22, 0
      %p43 = por %p41, %p42
      %p44 = scmp.ne.s32.totalorder %s30, %s31
      %p45 = scmp.eq.s32.totalorder %s23, 1
      %p46 = por %p44, %p45
      %p48 = scmp.ne.s32.totalorder %s31, %s47
      %p49 = scmp.eq.s32.totalorder %s23, 0
      %p50 = por %p48, %p49
      %s52 = sadd.s32 %s51, 1
      %p55 = scmp.eq.s32.totalorder %s17, 1
      %p56 = scmp.ne.s32.totalorder %s51, %s53
      %p57 = scmp.eq.s32.totalorder %s17, 0
      %p58 = por %p56, %p57
      %p59 = scmp.ne.s32.totalorder %s51, %s53
      %p60 = scmp.eq.s32.totalorder %s22, 1
      %p61 = por %p59, %p60
      %p62 = scmp.ne.s32.totalorder %s53, %s54
      %p63 = scmp.eq.s32.totalorder %s22, 0
      %p64 = por %p62, %p63
      %p65 = scmp.ne.s32.totalorder %s53, %s54
      %p66 = scmp.eq.s32.totalorder %s23, 1
      %p67 = por %p65, %p66
      %p69 = scmp.ne.s32.totalorder %s54, %s68
      %p70 = scmp.eq.s32.totalorder %s23, 0
      %p71 = por %p69, %p70
      %s73 = sadd.s32 %s72, 1
      %p76 = scmp.eq.s32.totalorder %s17, 1
      %p77 = scmp.ne.s32.totalorder %s72, %s74
      %p78 = scmp.eq.s32.totalorder %s17, 0
      %p79 = por %p77, %p78
      %p80 = scmp.ne.s32.totalorder %s72, %s74
      %p81 = scmp.eq.s32.totalorder %s22, 1
      %p82 = por %p80, %p81
      %p83 = scmp.ne.s32.totalorder %s74, %s75
      %p84 = scmp.eq.s32.totalorder %s22, 0
      %p85 = por %p83, %p84
      %p86 = scmp.ne.s32.totalorder %s74, %s75
      %p87 = scmp.eq.s32.totalorder %s23, 1
      %p88 = por %p86, %p87
      %p90 = scmp.ne.s32.totalorder %s75, %s89
      %p91 = scmp.eq.s32.totalorder %s23, 0
      %p92 = por %p90, %p91
      %s94 = sadd.s32 %s93, 1
      %p97 = scmp.eq.s32.totalorder %s17, 1
      %p98 = scmp.ne.s32.totalorder %s93, %s95
      %p99 = scmp.eq.s32.totalorder %s17, 0
      %p100 = por %p98, %p99
      %p101 = scmp.ne.s32.totalorder %s93, %s95
      %p102 = scmp.eq.s32.totalorder %s22, 1
      %p103 = por %p101, %p102
      %p104 = scmp.ne.s32.totalorder %s95, %s96
      %p105 = scmp.eq.s32.totalorder %s22, 0
      %p106 = por %p104, %p105
      %p107 = scmp.ne.s32.totalorder %s95, %s96
      %p108 = scmp.eq.s32.totalorder %s23, 1
      %p109 = por %p107, %p108
      %p111 = scmp.ne.s32.totalorder %s96, %s110
      %p112 = scmp.eq.s32.totalorder %s23, 0
      %p113 = por %p111, %p112
      %s114 = ssub.s32 %s17, %s24
      %p115 = scmp.eq.s32.totalorder %s114, 0
      %s117 = sadd.s32 %s116, 1
      %s118 = scalar_select %p115, %s116, %s117
      %p121 = pneg %p115
      %p122 = scmp.eq.s32.totalorder %s17, 1
      %p123 = por %p121, %p122
      %p124 = scmp.ne.s32.totalorder %s116, %s119
      %p125 = scmp.eq.s32.totalorder %s17, 0
      %p126 = por %p124, %p125
      %p127 = scmp.ne.s32.totalorder %s116, %s119
      %p128 = scmp.eq.s32.totalorder %s22, 1
      %p129 = por %p127, %p128
      %p130 = scmp.ne.s32.totalorder %s119, %s120
      %p131 = scmp.eq.s32.totalorder %s22, 0
      %p132 = por %p130, %p131
      %p133 = scmp.ne.s32.totalorder %s119, %s120
      %p134 = scmp.eq.s32.totalorder %s23, 1
      %p135 = por %p133, %p134
      %p137 = scmp.ne.s32.totalorder %s120, %s136
      %p138 = scmp.eq.s32.totalorder %s23, 0
      %p139 = por %p137, %p138
      %p140 = scmp.le.s32.totalorder 1, %s17
      %p141 = scmp.lt.s32.totalorder %s17, 3
      %p142 = pnand %p140, %p141
      %p143 = pneg %p142
      // Predicated region
      $region9: #{tpu_custom_call.1} parent=5 // pred_check
        _
      $region10: #{tpu_custom_call.1} parent=5 // pred_check_branch
        %145 = sbr.rel (%p142) target = $region12
      $region11: #{tpu_custom_call.1} parent=5 // pred_region
        %s146 = ssub.s32 %s17, 1
        // Predicated region
        $region13: #{tpu_custom_call.1} parent=11 // pred_check
          %p147 = pneg %p64
        $region14: #{tpu_custom_call.1} parent=11 // pred_check_branch
          %149 = sbr.rel (%p147) target = $region16
        $region15: #{tpu_custom_call.1} parent=11 // pred_region
          %s151 = ssub.s32 64, 64
          %152 = vsyncadd [#allocation7], %s151
          %s154 = sshll.u32 [#allocation6], 4
          %s155 = int_to_ptr.vmem [resolvable:$true] %s154
          %157 = dma.hbm_to_vmem [thread:$0]  %s1, 64, %s155, [#allocation7]
        $region16: #{tpu_custom_call.1} parent=11 // pred_fallthru
          _
        // Predicated region
        $region17: #{tpu_custom_call.1} parent=11 // pred_check
          %p158 = pneg %p85
        $region18: #{tpu_custom_call.1} parent=11 // pred_check_branch
          %160 = sbr.rel (%p158) target = $region20
        $region19: #{tpu_custom_call.1} parent=11 // pred_region
          _
        $region20: #{tpu_custom_call.1} parent=11 // pred_fallthru
          _
        // Predicated region
        $region21: #{tpu_custom_call.1} parent=11 // pred_check
          %p161 = pneg %p106
        $region22: #{tpu_custom_call.1} parent=11 // pred_check_branch
          %163 = sbr.rel (%p161) target = $region24
        $region23: #{tpu_custom_call.1} parent=11 // pred_region
          %s165 = ssub.s32 2304, 2304
          %166 = vsyncadd [#allocation7], %s165
          %s167 = sshll.u32 [#allocation8], 4
          %s168 = int_to_ptr.vmem [resolvable:$true] %s167
          %173 = dma.hbm_to_vmem [thread:$0]  %s3, 2304, %s168, [#allocation7], 256, 256, 16
        $region24: #{tpu_custom_call.1} parent=11 // pred_fallthru
          _
      $region12: #{tpu_custom_call.1} parent=5 // pred_fallthru
        _
      %p174 = scmp.lt.s32.totalorder %s17, 2
      // Predicated region
      $region25: #{tpu_custom_call.1} parent=5 // pred_check
        %p175 = pneg %p174
      $region26: #{tpu_custom_call.1} parent=5 // pred_check_branch
        %177 = sbr.rel (%p175) target = $region28
      $region27: #{tpu_custom_call.1} parent=5 // pred_region
        // Predicated region
        $region29: #{tpu_custom_call.1} parent=27 // pred_check
          %p178 = pneg %p37
        $region30: #{tpu_custom_call.1} parent=27 // pred_check_branch
          %180 = sbr.rel (%p178) target = $region32
        $region31: #{tpu_custom_call.1} parent=27 // pred_region
          %s181 = sand.u32 %s27, 1
          %s182 = scalar_lea.sflag [#allocation4], %s181
          %s183 = sand.u32 %s27, 1
          %s184 = smul.addr %s183, 16
          %s185 = scalar_lea.vmem [#allocation3], %s184
          %s187 = ssub.s32 256, 256
          %188 = vsyncadd %s182, %s187
          %s189 = smul.addr %s17, 2
          %s190 = smul.addr %s189, 128
          %s191 = scalar_lea.hbm %s0, %s190
          %s193 = sshll.u32 %s185, 4
          %s194 = int_to_ptr.vmem [resolvable:$true] %s193
          %196 = dma.hbm_to_vmem [thread:$0]  %s191, 256, %s194, %s182
        $region32: #{tpu_custom_call.1} parent=27 // pred_fallthru
          _
      $region28: #{tpu_custom_call.1} parent=5 // pred_fallthru
        _
      %p197 = scmp.le.s32.totalorder 1, %s17
      %p198 = scmp.lt.s32.totalorder %s17, 3
      %p199 = pnand %p197, %p198
      %p200 = pneg %p199
      // Predicated region
      $region33: #{tpu_custom_call.1} parent=5 // pred_check
        _
      $region34: #{tpu_custom_call.1} parent=5 // pred_check_branch
        %202 = sbr.rel (%p199) target = $region36
      $region35: #{tpu_custom_call.1} parent=5 // pred_region
        %s203 = ssub.s32 %s17, 1
        %s204 = sand.u32 %s30, 1
        %s205 = scalar_lea.sflag [#allocation4], %s204
        %s206 = sand.u32 %s30, 1
        %s207 = smul.addr %s206, 16
        %s208 = scalar_lea.vmem [#allocation3], %s207
        // Predicated region
        $region37: #{tpu_custom_call.1} parent=35 // pred_check
          %p209 = pneg %p43
        $region38: #{tpu_custom_call.1} parent=35 // pred_check_branch
          %211 = sbr.rel (%p209) target = $region40
        $region39: #{tpu_custom_call.1} parent=35 // pred_region
          %212 = dma.done %s205, 256
        $region40: #{tpu_custom_call.1} parent=35 // pred_fallthru
          _
        // Predicated region
        $region41: #{tpu_custom_call.1} parent=35 // pred_check
          %p213 = pneg %p64
        $region42: #{tpu_custom_call.1} parent=35 // pred_check_branch
          %215 = sbr.rel (%p213) target = $region44
        $region43: #{tpu_custom_call.1} parent=35 // pred_region
          %216 = dma.done [#allocation7], 64
        $region44: #{tpu_custom_call.1} parent=35 // pred_fallthru
          _
        // Predicated region
        $region45: #{tpu_custom_call.1} parent=35 // pred_check
          %p217 = pneg %p106
        $region46: #{tpu_custom_call.1} parent=35 // pred_check_branch
          %219 = sbr.rel (%p217) target = $region48
        $region47: #{tpu_custom_call.1} parent=35 // pred_region
          %220 = dma.done [#allocation7], 2304
        $region48: #{tpu_custom_call.1} parent=35 // pred_fallthru
          _
        %s221 = sand.u32 %s30, 1
        %s222 = scalar_lea.sflag [#allocation4], %s221
        %s223 = sand.u32 %s30, 1
        %s224 = smul.addr %s223, 16
        %s225 = scalar_lea.vmem [#allocation3], %s224
        %p226 = pneg %p43
        %p227 = pneg %p40
        %p228 = pneg %p64
        %p229 = pneg %p61
        %p230 = pneg %p85
        %p231 = pneg %p82
        %p232 = pneg %p106
        %p233 = pneg %p103
        %p234 = pneg %p132
        %p235 = pneg %p129
        %s236 = sand.u32 %s119, 1
        %s237 = scalar_lea.sflag [#allocation5], %s236
        %s238 = sand.u32 %s119, 1
        %s239 = smul.addr %s238, 16
        %s240 = scalar_lea.vmem [#allocation9], %s239
        %v242 = vld [vmem:[%s208] sm:$0xff]
        %v243 = vld [vmem:[%s208 + $0x8] sm:$0xff]
        %v244 = vlaneseq
        %v245 = vshrl.u32 %v244, 7
        %vm246 = vcmp.eq.s32.totalorder %v245, 0
        %v247 = vsel %vm246, 1.0, 0.0
        %v248 = vpack.c.bf16 %v247, %v247
        %v250 = vrot.slane %v248, 4
        %252 = vst [vmem:[#allocation2 + $0x40] sm:$0xf0] %v250
        %253 = vst [vmem:[#allocation2 + $0x48] sm:$0xf0] %v250
        %254 = vrot.lane.b32.xlu0 %v242, 17
        %v255 = vpop.permute.xlu0 %254
        %256 = vrot.lane.b32.xlu0 %v243, 17
        %v257 = vpop.permute.xlu0 %256
        %v258 = vlaneseq
        %v259 = vand.u32 %v258, 127
        %vm260 = vcmp.lt.s32.totalorder %v259, 17
        %v261 = vsel %vm260, %v255, %v257
        %v262 = vsel %vm260, %v257, %v255
        %v263 = vld [vmem:[#allocation8] sm:$0xff]
        %v264 = vld [vmem:[#allocation8 + $0x8] sm:$0xff]
        %v265 = vmul.f32 %v262, %v263
        %v266 = vmul.f32 %v261, %v264
        %v267 = vpack.c.bf16 %v265, %v265
        %v268 = vpack.c.bf16 %v266, %v266
        %269 = vst [vmem:[#allocation2] sm:$0xf] %v267
        %270 = vst [vmem:[#allocation2 + $0x8] sm:$0xf] %v268
        %271 = vrot.lane.b32.xlu0 %v242, 16
        %v272 = vpop.permute.xlu0 %271
        %273 = vrot.lane.b32.xlu0 %v243, 16
        %v274 = vpop.permute.xlu0 %273
        %vm275 = vcmp.lt.s32.totalorder %v259, 16
        %v276 = vsel %vm275, %v272, %v274
        %v277 = vsel %vm275, %v274, %v272
        %s278 = scalar_lea.vmem [#allocation8], 16
        %v279 = vld [vmem:[%s278] sm:$0xff]
        %v280 = vld [vmem:[%s278 + $0x8] sm:$0xff]
        %v281 = vmul.f32 %v277, %v279
        %v282 = vmul.f32 %v276, %v280
        %v283 = vpack.c.bf16 %v281, %v281
        %v284 = vpack.c.bf16 %v282, %v282
        %v287 = vrot.slane %v283, 4
        %v288 = vrot.slane %v284, 4
        %291 = vst [vmem:[#allocation2] sm:$0xf0] %v287
        %292 = vst [vmem:[#allocation2 + $0x8] sm:$0xf0] %v288
        %293 = vrot.lane.b32.xlu0 %v242, 15
        %v294 = vpop.permute.xlu0 %293
        %295 = vrot.lane.b32.xlu0 %v243, 15
        %v296 = vpop.permute.xlu0 %295
        %vm297 = vcmp.lt.s32.totalorder %v259, 15
        %v298 = vsel %vm297, %v294, %v296
        %v299 = vsel %vm297, %v296, %v294
        %s300 = scalar_lea.vmem [#allocation8], 32
        %v301 = vld [vmem:[%s300] sm:$0xff]
        %v302 = vld [vmem:[%s300 + $0x8] sm:$0xff]
        %v303 = vmul.f32 %v299, %v301
        %v304 = vmul.f32 %v298, %v302
        %v305 = vpack.c.bf16 %v303, %v303
        %v306 = vpack.c.bf16 %v304, %v304
        %307 = vst [vmem:[#allocation2 + $0x10] sm:$0xf] %v305
        %308 = vst [vmem:[#allocation2 + $0x18] sm:$0xf] %v306
        %309 = vrot.lane.b32.xlu0 %v242, 1
        %v310 = vpop.permute.xlu0 %309
        %311 = vrot.lane.b32.xlu0 %v243, 1
        %v312 = vpop.permute.xlu0 %311
        %vm313 = vcmp.lt.s32.totalorder %v259, 1
        %v314 = vsel %vm313, %v310, %v312
        %v315 = vsel %vm313, %v312, %v310
        %s316 = scalar_lea.vmem [#allocation8], 48
        %v317 = vld [vmem:[%s316] sm:$0xff]
        %v318 = vld [vmem:[%s316 + $0x8] sm:$0xff]
        %v319 = vmul.f32 %v315, %v317
        %v320 = vmul.f32 %v314, %v318
        %v321 = vpack.c.bf16 %v319, %v319
        %v322 = vpack.c.bf16 %v320, %v320
        %v325 = vrot.slane %v321, 4
        %v326 = vrot.slane %v322, 4
        %329 = vst [vmem:[#allocation2 + $0x10] sm:$0xf0] %v325
        %330 = vst [vmem:[#allocation2 + $0x18] sm:$0xf0] %v326
        %v331 = vpack.c.bf16 %v242, %v242
        %v332 = vpack.c.bf16 %v243, %v243
        %333 = vst [vmem:[#allocation2 + $0x20] sm:$0xf] %v331
        %334 = vst [vmem:[#allocation2 + $0x28] sm:$0xf] %v332
        %335 = vrot.lane.b32.xlu0 %v242, 127
        %v336 = vpop.permute.xlu0 %335
        %337 = vrot.lane.b32.xlu0 %v243, 127
        %v338 = vpop.permute.xlu0 %337
        %vm339 = vcmp.lt.s32.totalorder %v259, 127
        %v340 = vsel %vm339, %v336, %v338
        %v341 = vsel %vm339, %v338, %v336
        %s342 = scalar_lea.vmem [#allocation8], 80
        %v343 = vld [vmem:[%s342] sm:$0xff]
        %v344 = vld [vmem:[%s342 + $0x8] sm:$0xff]
        %v345 = vmul.f32 %v340, %v343
        %v346 = vmul.f32 %v341, %v344
        %v347 = vpack.c.bf16 %v345, %v345
        %v348 = vpack.c.bf16 %v346, %v346
        %v351 = vrot.slane %v347, 4
        %v352 = vrot.slane %v348, 4
        %355 = vst [vmem:[#allocation2 + $0x20] sm:$0xf0] %v351
        %356 = vst [vmem:[#allocation2 + $0x28] sm:$0xf0] %v352
        %357 = vrot.lane.b32.xlu0 %v242, 113
        %v358 = vpop.permute.xlu0 %357
        %359 = vrot.lane.b32.xlu0 %v243, 113
        %v360 = vpop.permute.xlu0 %359
        %vm361 = vcmp.lt.s32.totalorder %v259, 113
        %v362 = vsel %vm361, %v358, %v360
        %v363 = vsel %vm361, %v360, %v358
        %s364 = scalar_lea.vmem [#allocation8], 96
        %v365 = vld [vmem:[%s364] sm:$0xff]
        %v366 = vld [vmem:[%s364 + $0x8] sm:$0xff]
        %v367 = vmul.f32 %v362, %v365
        %v368 = vmul.f32 %v363, %v366
        %v369 = vpack.c.bf16 %v367, %v367
        %v370 = vpack.c.bf16 %v368, %v368
        %371 = vst [vmem:[#allocation2 + $0x30] sm:$0xf] %v369
        %372 = vst [vmem:[#allocation2 + $0x38] sm:$0xf] %v370
        %373 = vrot.lane.b32.xlu0 %v242, 112
        %v374 = vpop.permute.xlu0 %373
        %375 = vrot.lane.b32.xlu0 %v243, 112
        %v376 = vpop.permute.xlu0 %375
        %vm377 = vcmp.lt.s32.totalorder %v259, 112
        %v378 = vsel %vm377, %v374, %v376
        %v379 = vsel %vm377, %v376, %v374
        %s380 = scalar_lea.vmem [#allocation8], 112
        %v381 = vld [vmem:[%s380] sm:$0xff]
        %v382 = vld [vmem:[%s380 + $0x8] sm:$0xff]
        %v383 = vmul.f32 %v378, %v381
        %v384 = vmul.f32 %v379, %v382
        %v385 = vpack.c.bf16 %v383, %v383
        %v386 = vpack.c.bf16 %v384, %v384
        %v389 = vrot.slane %v385, 4
        %v390 = vrot.slane %v386, 4
        %393 = vst [vmem:[#allocation2 + $0x30] sm:$0xf0] %v389
        %394 = vst [vmem:[#allocation2 + $0x38] sm:$0xf0] %v390
        %395 = vrot.lane.b32.xlu0 %v242, 111
        %v396 = vpop.permute.xlu0 %395
        %397 = vrot.lane.b32.xlu0 %v243, 111
        %v398 = vpop.permute.xlu0 %397
        %vm399 = vcmp.lt.s32.totalorder %v259, 111
        %v400 = vsel %vm399, %v396, %v398
        %v401 = vsel %vm399, %v398, %v396
        %s402 = scalar_lea.vmem [#allocation8], 128
        %v403 = vld [vmem:[%s402] sm:$0xff]
        %v404 = vld [vmem:[%s402 + $0x8] sm:$0xff]
        %v405 = vmul.f32 %v400, %v403
        %v406 = vmul.f32 %v401, %v404
        %v407 = vpack.c.bf16 %v405, %v405
        %v408 = vpack.c.bf16 %v406, %v406
        %409 = vst [vmem:[#allocation2 + $0x40] sm:$0xf] %v407
        %410 = vst [vmem:[#allocation2 + $0x48] sm:$0xf] %v408
        %v411 = vld [vmem:[#allocation6] sm:$0xf]
        %v412 = vld [vmem:[#allocation2] sm:$0xff]
        %v413 = vld [vmem:[#allocation2 + $0x8] sm:$0xff]
        %v414 = vld [vmem:[#allocation2 + $0x10] sm:$0xff]
        %v415 = vld [vmem:[#allocation2 + $0x18] sm:$0xff]
        %v416 = vld [vmem:[#allocation2 + $0x20] sm:$0xff]
        %v417 = vld [vmem:[#allocation2 + $0x28] sm:$0xff]
        %v418 = vld [vmem:[#allocation2 + $0x30] sm:$0xff]
        %v419 = vld [vmem:[#allocation2 + $0x38] sm:$0xff]
        %v420 = vld [vmem:[#allocation2 + $0x40] sm:$0xff]
        %v421 = vld [vmem:[#allocation2 + $0x48] sm:$0xff]
        %vm422 = vcmask 654336
        %v424 = vsel %vm422, %v411, 0
        %426 = vmatprep.subr.bf16.mxu0 %v413
        %427 = vmatpush1.bf16.msra.mxu0 %v412
        %428 = vmatprep.subr.bf16.mxu0 %v415
        %429 = vmatpush1.bf16.msra.mxu0 %v414
        %430 = vmatprep.subr.bf16.mxu0 %v417
        %431 = vmatpush1.bf16.msra.mxu0 %v416
        %432 = vmatprep.subr.bf16.mxu0 %v419
        %433 = vmatpush1.bf16.msra.mxu0 %v418
        %434 = vmatprep.subr.bf16.mxu0 %v421
        %435 = vmatpush1.bf16.msra.mxu0 %v420
        %436 = vmatprep.subr.bf16.mxu0 0
        %437 = vmatpush1.bf16.msra.mxu0 0
        %438 = vmatprep.subr.bf16.mxu0 0
        %439 = vmatpush1.bf16.msra.mxu0 0
        %440 = vmatprep.subr.bf16.mxu0 0
        %441 = vmatpush1.bf16.msra.mxu0 0
        %442 = vmatprep.subr.bf16.mxu0 0
        %443 = vmatpush1.bf16.msra.mxu0 0
        %444 = vmatprep.subr.bf16.mxu0 0
        %445 = vmatpush1.bf16.msra.mxu0 0
        %446 = vmatprep.subr.bf16.mxu0 0
        %447 = vmatpush1.bf16.msra.mxu0 0
        %448 = vmatprep.subr.bf16.mxu0 0
        %449 = vmatpush1.bf16.msra.mxu0 0
        %450 = vmatprep.subr.bf16.mxu0 0
        %451 = vmatpush1.bf16.msra.mxu0 0
        %452 = vmatprep.subr.bf16.mxu0 0
        %453 = vmatpush1.bf16.msra.mxu0 0
        %454 = vmatprep.subr.bf16.mxu0 0
        %455 = vmatpush1.bf16.msra.mxu0 0
        %456 = vmatprep.subr.bf16.mxu0 0
        %457 = vmatpush1.bf16.msra.mxu0 0
        %458 = vmatprep.mubr.bf16.mxu0 0
        %459 = vmatmul.mubr.bf16.gmra.mrb[0].mxu0 %v424
        %v460 = vpop.f32.mrb[0].mxu0
        %v461 = vadd.f32 0.0, %v460
        %v462 = vpop.f32.mrb[0].mxu0
        %v463 = vadd.f32 0.0, %v462
        %v464 = vpop.f32.mrb[0].mxu0
        %v465 = vpop.f32.mrb[0].mxu0
        %466 = vdwg.mxu0
        %v467 = vmax.f32 %v461, 0.0
        %v468 = vmax.f32 %v463, 0.0
        %469 = vrot.lane.b32.xlu0 %v467, 17
        %v470 = vpop.permute.xlu0 %469
        %471 = vrot.lane.b32.xlu0 %v468, 17
        %v472 = vpop.permute.xlu0 %471
        %v473 = vsel %vm260, %v470, %v472
        %v474 = vsel %vm260, %v472, %v470
        %v475 = vld [vmem:[#allocation8] sm:$0xff]
        %v476 = vld [vmem:[#allocation8 + $0x8] sm:$0xff]
        %v477 = vmul.f32 %v474, %v475
        %v478 = vmul.f32 %v473, %v476
        %v479 = vpack.c.bf16 %v477, %v477
        %v480 = vpack.c.bf16 %v478, %v478
        %481 = vst [vmem:[#allocation2] sm:$0xf] %v479
        %482 = vst [vmem:[#allocation2 + $0x8] sm:$0xf] %v480
        %483 = vrot.lane.b32.xlu0 %v467, 16
        %v484 = vpop.permute.xlu0 %483
        %485 = vrot.lane.b32.xlu0 %v468, 16
        %v486 = vpop.permute.xlu0 %485
        %v487 = vsel %vm275, %v484, %v486
        %v488 = vsel %vm275, %v486, %v484
        %v489 = vld [vmem:[%s278] sm:$0xff]
        %v490 = vld [vmem:[%s278 + $0x8] sm:$0xff]
        %v491 = vmul.f32 %v488, %v489
        %v492 = vmul.f32 %v487, %v490
        %v493 = vpack.c.bf16 %v491, %v491
        %v494 = vpack.c.bf16 %v492, %v492
        %v497 = vrot.slane %v493, 4
        %v498 = vrot.slane %v494, 4
        %501 = vst [vmem:[#allocation2] sm:$0xf0] %v497
        %502 = vst [vmem:[#allocation2 + $0x8] sm:$0xf0] %v498
        %503 = vrot.lane.b32.xlu0 %v467, 15
        %v504 = vpop.permute.xlu0 %503
        %505 = vrot.lane.b32.xlu0 %v468, 15
        %v506 = vpop.permute.xlu0 %505
        %v507 = vsel %vm297, %v504, %v506
        %v508 = vsel %vm297, %v506, %v504
        %v509 = vld [vmem:[%s300] sm:$0xff]
        %v510 = vld [vmem:[%s300 + $0x8] sm:$0xff]
        %v511 = vmul.f32 %v508, %v509
        %v512 = vmul.f32 %v507, %v510
        %v513 = vpack.c.bf16 %v511, %v511
        %v514 = vpack.c.bf16 %v512, %v512
        %515 = vst [vmem:[#allocation2 + $0x10] sm:$0xf] %v513
        %516 = vst [vmem:[#allocation2 + $0x18] sm:$0xf] %v514
        %517 = vrot.lane.b32.xlu0 %v467, 1
        %v518 = vpop.permute.xlu0 %517
        %519 = vrot.lane.b32.xlu0 %v468, 1
        %v520 = vpop.permute.xlu0 %519
        %v521 = vsel %vm313, %v518, %v520
        %v522 = vsel %vm313, %v520, %v518
        %v523 = vld [vmem:[%s316] sm:$0xff]
        %v524 = vld [vmem:[%s316 + $0x8] sm:$0xff]
        %v525 = vmul.f32 %v522, %v523
        %v526 = vmul.f32 %v521, %v524
        %v527 = vpack.c.bf16 %v525, %v525
        %v528 = vpack.c.bf16 %v526, %v526
        %v531 = vrot.slane %v527, 4
        %v532 = vrot.slane %v528, 4
        %535 = vst [vmem:[#allocation2 + $0x10] sm:$0xf0] %v531
        %536 = vst [vmem:[#allocation2 + $0x18] sm:$0xf0] %v532
        %v537 = vpack.c.bf16 %v467, %v467
        %v538 = vpack.c.bf16 %v468, %v468
        %539 = vst [vmem:[#allocation2 + $0x20] sm:$0xf] %v537
        %540 = vst [vmem:[#allocation2 + $0x28] sm:$0xf] %v538
        %541 = vrot.lane.b32.xlu0 %v467, 127
        %v542 = vpop.permute.xlu0 %541
        %543 = vrot.lane.b32.xlu0 %v468, 127
        %v544 = vpop.permute.xlu0 %543
        %v545 = vsel %vm339, %v542, %v544
        %v546 = vsel %vm339, %v544, %v542
        %v547 = vld [vmem:[%s342] sm:$0xff]
        %v548 = vld [vmem:[%s342 + $0x8] sm:$0xff]
        %v549 = vmul.f32 %v545, %v547
        %v550 = vmul.f32 %v546, %v548
        %v551 = vpack.c.bf16 %v549, %v549
        %v552 = vpack.c.bf16 %v550, %v550
        %v555 = vrot.slane %v551, 4
        %v556 = vrot.slane %v552, 4
        %559 = vst [vmem:[#allocation2 + $0x20] sm:$0xf0] %v555
        %560 = vst [vmem:[#allocation2 + $0x28] sm:$0xf0] %v556
        %561 = vrot.lane.b32.xlu0 %v467, 113
        %v562 = vpop.permute.xlu0 %561
        %563 = vrot.lane.b32.xlu0 %v468, 113
        %v564 = vpop.permute.xlu0 %563
        %v565 = vsel %vm361, %v562, %v564
        %v566 = vsel %vm361, %v564, %v562
        %v567 = vld [vmem:[%s364] sm:$0xff]
        %v568 = vld [vmem:[%s364 + $0x8] sm:$0xff]
        %v569 = vmul.f32 %v565, %v567
        %v570 = vmul.f32 %v566, %v568
        %v571 = vpack.c.bf16 %v569, %v569
        %v572 = vpack.c.bf16 %v570, %v570
        %573 = vst [vmem:[#allocation2 + $0x30] sm:$0xf] %v571
        %574 = vst [vmem:[#allocation2 + $0x38] sm:$0xf] %v572
        %575 = vrot.lane.b32.xlu0 %v467, 112
        %v576 = vpop.permute.xlu0 %575
        %577 = vrot.lane.b32.xlu0 %v468, 112
        %v578 = vpop.permute.xlu0 %577
        %v579 = vsel %vm377, %v576, %v578
        %v580 = vsel %vm377, %v578, %v576
        %v581 = vld [vmem:[%s380] sm:$0xff]
        %v582 = vld [vmem:[%s380 + $0x8] sm:$0xff]
        %v583 = vmul.f32 %v579, %v581
        %v584 = vmul.f32 %v580, %v582
        %v585 = vpack.c.bf16 %v583, %v583
        %v586 = vpack.c.bf16 %v584, %v584
        %v589 = vrot.slane %v585, 4
        %v590 = vrot.slane %v586, 4
        %593 = vst [vmem:[#allocation2 + $0x30] sm:$0xf0] %v589
        %594 = vst [vmem:[#allocation2 + $0x38] sm:$0xf0] %v590
        %595 = vrot.lane.b32.xlu0 %v467, 111
        %v596 = vpop.permute.xlu0 %595
        %597 = vrot.lane.b32.xlu0 %v468, 111
        %v598 = vpop.permute.xlu0 %597
        %v599 = vsel %vm399, %v596, %v598
        %v600 = vsel %vm399, %v598, %v596
        %v601 = vld [vmem:[%s402] sm:$0xff]
        %v602 = vld [vmem:[%s402 + $0x8] sm:$0xff]
        %v603 = vmul.f32 %v599, %v601
        %v604 = vmul.f32 %v600, %v602
        %v605 = vpack.c.bf16 %v603, %v603
        %v606 = vpack.c.bf16 %v604, %v604
        %607 = vst [vmem:[#allocation2 + $0x40] sm:$0xf] %v605
        %608 = vst [vmem:[#allocation2 + $0x48] sm:$0xf] %v606
        %v609 = vld [vmem:[%s2] sm:$0xf]
        %v610 = vld [vmem:[#allocation2] sm:$0xff]
        %v611 = vld [vmem:[#allocation2 + $0x8] sm:$0xff]
        %v612 = vld [vmem:[#allocation2 + $0x10] sm:$0xff]
        %v613 = vld [vmem:[#allocation2 + $0x18] sm:$0xff]
        %v614 = vld [vmem:[#allocation2 + $0x20] sm:$0xff]
        %v615 = vld [vmem:[#allocation2 + $0x28] sm:$0xff]
        %v616 = vld [vmem:[#allocation2 + $0x30] sm:$0xff]
        %v617 = vld [vmem:[#allocation2 + $0x38] sm:$0xff]
        %v618 = vld [vmem:[#allocation2 + $0x40] sm:$0xff]
        %v619 = vld [vmem:[#allocation2 + $0x48] sm:$0xff]
        %v621 = vsel %vm422, %v609, 0
        %623 = vmatprep.subr.bf16.mxu0 %v611
        %624 = vmatpush1.bf16.msra.mxu0 %v610
        %625 = vmatprep.subr.bf16.mxu0 %v613
        %626 = vmatpush1.bf16.msra.mxu0 %v612
        %627 = vmatprep.subr.bf16.mxu0 %v615
        %628 = vmatpush1.bf16.msra.mxu0 %v614
        %629 = vmatprep.subr.bf16.mxu0 %v617
        %630 = vmatpush1.bf16.msra.mxu0 %v616
        %631 = vmatprep.subr.bf16.mxu0 %v619
        %632 = vmatpush1.bf16.msra.mxu0 %v618
        %633 = vmatprep.subr.bf16.mxu0 0
        %634 = vmatpush1.bf16.msra.mxu0 0
        %635 = vmatprep.subr.bf16.mxu0 0
        %636 = vmatpush1.bf16.msra.mxu0 0
        %637 = vmatprep.subr.bf16.mxu0 0
        %638 = vmatpush1.bf16.msra.mxu0 0
        %639 = vmatprep.subr.bf16.mxu0 0
        %640 = vmatpush1.bf16.msra.mxu0 0
        %641 = vmatprep.subr.bf16.mxu0 0
        %642 = vmatpush1.bf16.msra.mxu0 0
        %643 = vmatprep.subr.bf16.mxu0 0
        %644 = vmatpush1.bf16.msra.mxu0 0
        %645 = vmatprep.subr.bf16.mxu0 0
        %646 = vmatpush1.bf16.msra.mxu0 0
        %647 = vmatprep.subr.bf16.mxu0 0
        %648 = vmatpush1.bf16.msra.mxu0 0
        %649 = vmatprep.subr.bf16.mxu0 0
        %650 = vmatpush1.bf16.msra.mxu0 0
        %651 = vmatprep.subr.bf16.mxu0 0
        %652 = vmatpush1.bf16.msra.mxu0 0
        %653 = vmatprep.subr.bf16.mxu0 0
        %654 = vmatpush1.bf16.msra.mxu0 0
        %655 = vmatprep.mubr.bf16.mxu0 0
        %656 = vmatmul.mubr.bf16.gmra.mrb[0].mxu0 %v621
        %v657 = vpop.f32.mrb[0].mxu0
        %v658 = vadd.f32 %v242, %v657
        %v659 = vpop.f32.mrb[0].mxu0
        %v660 = vadd.f32 %v243, %v659
        %v661 = vpop.f32.mrb[0].mxu0
        %v662 = vpop.f32.mrb[0].mxu0
        %663 = vdwg.mxu0
        %v664 = vmax.f32 %v658, 0.0
        %v665 = vmax.f32 %v660, 0.0
        %666 = vst [vmem:[%s240] sm:$0xff] %v664
        %667 = vst [vmem:[%s240 + $0x8] sm:$0xff] %v665
        %s668 = sand.u32 %s119, 1
        %s669 = scalar_lea.sflag [#allocation5], %s668
        %s670 = sand.u32 %s119, 1
        %s671 = smul.addr %s670, 16
        %s672 = scalar_lea.vmem [#allocation9], %s671
        // Predicated region
        $region49: #{tpu_custom_call.1} parent=35 // pred_check
          %p673 = pneg %p129
        $region50: #{tpu_custom_call.1} parent=35 // pred_check_branch
          %675 = sbr.rel (%p673) target = $region52
        $region51: #{tpu_custom_call.1} parent=35 // pred_region
          %s677 = ssub.s32 256, 256
          %678 = vsyncadd %s669, %s677
          %s679 = smul.addr %s22, 2
          %s680 = smul.addr %s679, 128
          %s681 = scalar_lea.hbm %s4, %s680
          %s683 = sshll.u32 %s672, 4
          %s684 = int_to_ptr.vmem [resolvable:$true] %s683
          %686 = dma.vmem_to_hbm [thread:$0]  %s684, 256, %s681, %s669
        $region52: #{tpu_custom_call.1} parent=35 // pred_fallthru
          _
      $region36: #{tpu_custom_call.1} parent=5 // pred_fallthru
        _
      %p687 = scmp.le.s32.totalorder 2, %s17
      // Predicated region
      $region53: #{tpu_custom_call.1} parent=5 // pred_check
        %p688 = pneg %p687
      $region54: #{tpu_custom_call.1} parent=5 // pred_check_branch
        %690 = sbr.rel (%p688) target = $region56
      $region55: #{tpu_custom_call.1} parent=5 // pred_region
        %s691 = ssub.s32 %s17, 2
        // Predicated region
        $region57: #{tpu_custom_call.1} parent=55 // pred_check
          %p692 = pneg %p135
        $region58: #{tpu_custom_call.1} parent=55 // pred_check_branch
          %694 = sbr.rel (%p692) target = $region60
        $region59: #{tpu_custom_call.1} parent=55 // pred_region
          %s695 = sand.u32 %s120, 1
          %s696 = scalar_lea.sflag [#allocation5], %s695
          %s697 = sand.u32 %s120, 1
          %s698 = smul.addr %s697, 16
          %s699 = scalar_lea.vmem [#allocation9], %s698
          %700 = dma.done %s696, 256
        $region60: #{tpu_custom_call.1} parent=55 // pred_fallthru
          _
      $region56: #{tpu_custom_call.1} parent=5 // pred_fallthru
        _
    $region6: #{tpu_custom_call.1} parent=1 // loop_footer
      %s21 = sadd.s32 1, %s17
    $region7: #{tpu_custom_call.1} parent=1 // loop_footer_branch
      %16 = sbr.rel target = $region3
    $region8: #{tpu_custom_call.1} parent=1 // loop_exit
      _
    %701 = vsyncpa [#allocation4], 1
    %s702 = scalar_lea.sflag [#allocation4], 1
    %703 = vsyncpa %s702, 1
    %704 = vsyncpa [#allocation7], 1
    %705 = vsyncpa [#allocation5], 1
    %s706 = scalar_lea.sflag [#allocation5], 1
    %707 = vsyncpa %s706, 1

</llo_original>
